<compile_context>
chip_gen: v7x
topology: tpu7x:2x2x1
jax: 0.10.0
libtpu: 0.0.40
codegen_flags: <defaults>
</compile_context>

<pallas_src>
import jax
import jax.numpy as jnp
from jax.experimental import pallas as pl
from jax.experimental.pallas import tpu as pltpu


def _attention_kernel(x_ref, w_ref, att_ref, h2_ref):
    # x_ref: (BB, T, D), w_ref: (1, D), att_ref: (BB, D), h2_ref: (BB, T)
    x = x_ref[...].astype(jnp.float32)               # (BB, T, D)
    w = w_ref[...].astype(jnp.float32)               # (1, D)

    # H0 = tanh(x); H1[b, t] = sum_d H0[b, t, d] * w[d]
    h0 = jnp.tanh(x)                                 # EUP
    h1 = jnp.sum(h0 * w[None, :, :], axis=-1)        # (BB, T)

    # H2 = softmax(H1) over T (axis=1), numerically stable, in f32.
    m = jnp.max(h1, axis=1, keepdims=True)           # (BB, 1)
    e = jnp.exp(h1 - m)                              # (BB, T)
    s = jnp.sum(e, axis=1, keepdims=True)            # (BB, 1)
    inv_s = pl.reciprocal(s, approx=True)            # EUP slot (free after tanh/exp)
    inv_s = inv_s * (2.0 - s * inv_s)                # one Newton step -> ~f32 exact
    h2 = e * inv_s                                   # (BB, T)

    # att_hidden[b, d] = sum_t x[b, t, d] * H2[b, t]
    att = jnp.sum(x * h2[:, :, None], axis=1)        # (BB, D)

    att_ref[...] = att.astype(att_ref.dtype)         # lane-dense (BB, D) store
    h2_ref[...] = h2.astype(h2_ref.dtype)            # lane-dense (BB, T) store


def _choose_block_b(B, T, D, itemsize, target_block_bytes):
    """Pick the batch-block size BB for the (BB, T, D) x tile."""
    if B <= 8:
        return B                                      # full dim -> always a legal block
    bb = max(1, target_block_bytes // (T * D * itemsize))
    if B >= 16:
        bb = min(bb, B // 2)                          # keep >=2 grid steps (megacore)
    bb = min(bb, B)
    if bb < B:
        # (BB, D)/(BB, T) output blocks need BB % 8 == 0 when BB != B.
        bb = max(8, (bb // 8) * 8)
        bb = min(bb, B)
    return bb


def attention_forward(x, w, *, target_block_bytes=4 << 20, vmem_limit_bytes=48 << 20):
    """x: [B, T, D], w: [D]. Returns (att_hidden [B, D], H2 [B, T])."""
    B, T, D = x.shape
    w2d = w.reshape(1, D)

    itemsize = jnp.dtype(x.dtype).itemsize
    bb = _choose_block_b(B, T, D, itemsize, target_block_bytes)
    grid = (pl.cdiv(B, bb),)

    cost = pl.CostEstimate(
        flops=4 * B * T * D,
        transcendentals=B * T * D + B * T + B,        # tanh + exp + reciprocal
        bytes_accessed=(B * T * D + D + B * D + B * T) * itemsize,
    )

    att, h2 = pl.pallas_call(
        _attention_kernel,
        out_shape=(
            jax.ShapeDtypeStruct((B, D), x.dtype),
            jax.ShapeDtypeStruct((B, T), x.dtype),
        ),
        grid_spec=pltpu.PrefetchScalarGridSpec(
            num_scalar_prefetch=0,
            grid=grid,
            in_specs=[
                pl.BlockSpec((bb, T, D), lambda b: (b, 0, 0)),
                pl.BlockSpec((1, D), lambda b: (0, 0)),
            ],
            out_specs=(
                pl.BlockSpec((bb, D), lambda b: (b, 0)),
                pl.BlockSpec((bb, T), lambda b: (b, 0)),
            ),
        ),
        compiler_params=pltpu.CompilerParams(
            dimension_semantics=("parallel",),
            vmem_limit_bytes=vmem_limit_bytes,
        ),
        cost_estimate=cost,
    )(x, w2d)

    return att, h2


def attention_reference(x, w):
    h0 = jnp.tanh(x)
    h1 = jnp.einsum("btd,d->bt", h0, w)
    h2 = jax.nn.softmax(h1, axis=1)
    att = jnp.sum(x * h2[:, :, None], axis=1)
    return att, h2


def _check(x, w, atol=1e-4, rtol=1e-4):
    att, h2 = attention_forward(x, w)
    att = jax.block_until_ready(att)
    h2 = jax.block_until_ready(h2)
    att_ref, h2_ref = attention_reference(x, w)
    assert jnp.allclose(att, att_ref, atol=atol, rtol=rtol)
    assert jnp.allclose(h2, h2_ref, atol=atol, rtol=rtol)


if __name__ == "__main__":
    key = jax.random.PRNGKey(0)
    kx, kw, kx2, kw2 = jax.random.split(key, 4)

    # Small shape consistent with the module (hidden_dim=16 -> D = 2*16 = 32).
    B, T, hidden_dim = 2, 8, 16
    D = 2 * hidden_dim
    x = jax.random.normal(kx, (B, T, D), dtype=jnp.float32)
    w = 0.1 * jax.random.normal(kw, (D,), dtype=jnp.float32)
    _check(x, w)

    # Larger shape to exercise the batch-blocked (multi-grid-step) path.
    B2, T2, D2 = 32, 128, 256
    x2 = jax.random.normal(kx2, (B2, T2, D2), dtype=jnp.float32)
    w2 = 0.1 * jax.random.normal(kw2, (D2,), dtype=jnp.float32)
    _check(x2, w2)

    print("KERNEL_OK")
</pallas_src>

<mosaic_0001>
module attributes {stable_mosaic.version = 11 : i64} {
  func.func @_attention_kernel(%arg0: i32, %arg1: memref<2x8x32xf32, #tpu.memory_space<vmem>>, %arg2: memref<1x32xf32, #tpu.memory_space<vmem>>, %arg3: memref<2x32xf32, #tpu.memory_space<vmem>>, %arg4: memref<2x8xf32, #tpu.memory_space<vmem>>) attributes {dimension_semantics = [#tpu.dimension_semantics<parallel>], iteration_bounds = array<i64: 1>, scalar_prefetch = 0 : i64, scratch_operands = 0 : i64, tpu.core_type = #tpu.core_type<tc>, window_params = [{transform_indices = @transform_0, window_bounds = array<i64: 2, 8, 32>}, {pipeline_mode = #tpu.pipeline_mode<synchronous>, transform_indices = @transform_1, window_bounds = array<i64: 1, 32>}, {transform_indices = @transform_2, window_bounds = array<i64: 2, 32>}, {transform_indices = @transform_3, window_bounds = array<i64: 2, 8>}]} {
    %c0 = arith.constant 0 : index
    %c0_0 = arith.constant 0 : index
    %c0_1 = arith.constant 0 : index
    %0 = vector.load %arg1[%c0, %c0_0, %c0_1] : memref<2x8x32xf32, #tpu.memory_space<vmem>>, vector<2x8x32xf32>
    %c0_2 = arith.constant 0 : index
    %c0_3 = arith.constant 0 : index
    %1 = vector.load %arg2[%c0_2, %c0_3] : memref<1x32xf32, #tpu.memory_space<vmem>>, vector<1x32xf32>
    %2 = math.tanh %0 : vector<2x8x32xf32>
    %3 = vector.shape_cast %1 : vector<1x32xf32> to vector<1x1x32xf32>
    %4 = vector.broadcast %3 : vector<1x1x32xf32> to vector<2x8x32xf32>
    %5 = arith.mulf %2, %4 : vector<2x8x32xf32>
    %cst = arith.constant dense<0.000000e+00> : vector<2x8xf32>
    %6 = vector.multi_reduction <add>, %5, %cst [2] : vector<2x8x32xf32> to vector<2x8xf32>
    %cst_4 = arith.constant dense<0xFF800000> : vector<2xf32>
    %7 = vector.multi_reduction <maximumf>, %6, %cst_4 [1] : vector<2x8xf32> to vector<2xf32>
    %8 = vector.shape_cast %7 : vector<2xf32> to vector<2x1xf32>
    %9 = vector.broadcast %8 : vector<2x1xf32> to vector<2x8xf32>
    %10 = arith.subf %6, %9 : vector<2x8xf32>
    %11 = math.exp %10 : vector<2x8xf32>
    %cst_5 = arith.constant dense<0.000000e+00> : vector<2xf32>
    %12 = vector.multi_reduction <add>, %11, %cst_5 [1] : vector<2x8xf32> to vector<2xf32>
    %13 = vector.shape_cast %12 : vector<2xf32> to vector<2x1xf32>
    %14 = tpu.reciprocal %13 {approx = true} : vector<2x1xf32> -> vector<2x1xf32>
    %15 = arith.mulf %13, %14 : vector<2x1xf32>
    %cst_6 = arith.constant 2.000000e+00 : f32
    %16 = vector.broadcast %cst_6 : f32 to vector<2x1xf32>
    %17 = arith.subf %16, %15 : vector<2x1xf32>
    %18 = arith.mulf %14, %17 : vector<2x1xf32>
    %19 = vector.broadcast %18 : vector<2x1xf32> to vector<2x8xf32>
    %20 = arith.mulf %11, %19 : vector<2x8xf32>
    %21 = vector.shape_cast %20 : vector<2x8xf32> to vector<2x8x1xf32>
    %22 = vector.broadcast %21 : vector<2x8x1xf32> to vector<2x8x32xf32>
    %23 = arith.mulf %0, %22 : vector<2x8x32xf32>
    %cst_7 = arith.constant dense<0.000000e+00> : vector<2x32xf32>
    %24 = vector.multi_reduction <add>, %23, %cst_7 [1] : vector<2x8x32xf32> to vector<2x32xf32>
    %c0_8 = arith.constant 0 : index
    %c0_9 = arith.constant 0 : index
    %25 = vector.load %arg3[%c0_8, %c0_9] : memref<2x32xf32, #tpu.memory_space<vmem>>, vector<2x32xf32>
    tpu.vector_store %arg3[%c0_8, %c0_9], %24 {strides = array<i32>} : memref<2x32xf32, #tpu.memory_space<vmem>>, vector<2x32xf32>,
    %c0_10 = arith.constant 0 : index
    %c0_11 = arith.constant 0 : index
    %26 = vector.load %arg4[%c0_10, %c0_11] : memref<2x8xf32, #tpu.memory_space<vmem>>, vector<2x8xf32>
    tpu.vector_store %arg4[%c0_10, %c0_11], %20 {strides = array<i32>} : memref<2x8xf32, #tpu.memory_space<vmem>>, vector<2x8xf32>,
    return
  }
  func.func @transform_0(%arg0: i32) -> (i32, i32, i32) {
    %c0_i32 = arith.constant 0 : i32
    %c0_i32_0 = arith.constant 0 : i32
    %c0_i32_1 = arith.constant 0 : i32
    return %arg0, %c0_i32, %c0_i32_0 : i32, i32, i32
  }
  func.func @transform_1(%arg0: i32) -> (i32, i32) {
    %c0_i32 = arith.constant 0 : i32
    %c0_i32_0 = arith.constant 0 : i32
    %c0_i32_1 = arith.constant 0 : i32
    return %c0_i32, %c0_i32_0 : i32, i32
  }
  func.func @transform_2(%arg0: i32) -> (i32, i32) {
    %c0_i32 = arith.constant 0 : i32
    %c0_i32_0 = arith.constant 0 : i32
    return %arg0, %c0_i32 : i32, i32
  }
  func.func @transform_3(%arg0: i32) -> (i32, i32) {
    %c0_i32 = arith.constant 0 : i32
    %c0_i32_0 = arith.constant 0 : i32
    return %arg0, %c0_i32 : i32, i32
  }
}

</mosaic_0001>

<llo_original>
// kernel: tpu_custom_call.1
$region0: #{tpu_custom_call.1}
  #allocation0 [shape = 'u32[]', space=smem, size = 0x4, offset = 0x4, fixed_abs, tag = 'smem constant byte address 0x4 - core index']
  #allocation1 [shape = 'u32[144,128]{1,0:T(1,128)}', space=vmem, size = 0x12000, scoped, tag = 'internal scratch']
  %s0 = inlined_call_operand.hbm [shape: f32[2,8,32], index: 0, kind: input, shape index: {}]
  %s1 = inlined_call_operand.vmem [shape: f32[1,32], index: 1, kind: input, shape index: {}]
  %s2 = inlined_call_operand.hbm [shape: f32[2,32], index: 2, kind: output, shape index: {0}]
  %s3 = inlined_call_operand.hbm [shape: f32[2,8], index: 3, kind: output, shape index: {1}]
  %4 = xla_tuple %s2, %s3
  %s5 = sld [smem:[#allocation0]]
  $region30: #{tpu_custom_call.1} parent=0
    _
  %s7 = ssub.s32 1, %s5
  %s8 = scalar_select 0, %s7, %s5
  $region1: #{tpu_custom_call.1} parent=0
    #allocation2 [shape = 'u8[8192]{0}', space=vmem, size = 0x2000, scoped, tag = 'input window, operand 0, single buffered']
    #allocation3 [shape = 's32[1]{0}', space=sflag, size = 0x4, scoped, tag = 'scoped memory for tpu_custom_call.1']
    #allocation4 [shape = 's32[1]{0}', space=sflag, size = 0x4, scoped, tag = 'scoped memory for tpu_custom_call.1']
    #allocation5 [shape = 'u8[1024]{0}', space=vmem, size = 0x400, scoped, tag = 'output window, operand 0, single buffered']
    #allocation6 [shape = 'u8[1024]{0}', space=vmem, size = 0x400, scoped, tag = 'output window, operand 1, single buffered']
    #allocation7 [shape = 's32[1]{0}', space=sflag, size = 0x4, scoped, tag = 'scoped memory for tpu_custom_call.1']
    %9 = vsyncpa [#allocation3], 0
    %10 = vsyncpa [#allocation4], 0
    %11 = vsyncpa [#allocation7], 0
    // Predicated region
    $region2: #{tpu_custom_call.1} parent=1 // pred_check
      _
    $region3: #{tpu_custom_call.1} parent=1 // pred_check_branch
      %13 = sbr.rel (0) target = $region5
    $region4: #{tpu_custom_call.1} parent=1 // pred_region
      %s15 = ssub.s32 256, 256
      %16 = vsyncadd [#allocation3], %s15
      %s17 = sshll.u32 [#allocation2], 4
      %s18 = int_to_ptr.vmem [resolvable:$true] %s17
      %23 = dma.hbm_to_vmem [thread:$0]  %s0, 256, %s18, [#allocation3], 128, 128, 8
    $region5: #{tpu_custom_call.1} parent=1 // pred_fallthru
      _
    // Predicated region
    $region6: #{tpu_custom_call.1} parent=1 // pred_check
      _
    $region7: #{tpu_custom_call.1} parent=1 // pred_check_branch
      %25 = sbr.rel (0) target = $region9
    $region8: #{tpu_custom_call.1} parent=1 // pred_region
      _
    $region9: #{tpu_custom_call.1} parent=1 // pred_fallthru
      _
    // Predicated region
    $region10: #{tpu_custom_call.1} parent=1 // pred_check
      _
    $region11: #{tpu_custom_call.1} parent=1 // pred_check_branch
      %27 = sbr.rel (0) target = $region13
    $region12: #{tpu_custom_call.1} parent=1 // pred_region
      %28 = dma.done [#allocation3], 256
    $region13: #{tpu_custom_call.1} parent=1 // pred_fallthru
      _
    %v29 = vld [vmem:[#allocation2] sm:$0xff]
    %v30 = vld [vmem:[#allocation2 + $0x8] sm:$0xff]
    %v31 = vld [vmem:[%s1] sm:$0x1]
    %v32 = vtanh.pop %v29
    %v33 = vtanh.pop %v30
    %v35 = vlaneseq
    %v36 = vshrl.u32 %v35, 7
    %v37 = vsub.s32 0, %v36
    %v38 = vrot.slane %v31, %v37
    %v40 = vmul.f32 %v32, %v38
    %v41 = vmul.f32 %v33, %v38
    %vm42 = vcmask 261120
    %v43 = vsel %vm42, %v40, 0.0
    %44 = vadd.xlane.f32.xlu0 %v43
    %v45 = vpop.xlane.xlu0 %44
    %v46 = vsel %vm42, %v41, 0.0
    %47 = vadd.xlane.f32.xlu0 %v46
    %v48 = vpop.xlane.xlu0 %47
    %v51 = vlaneseq
    %v52 = vand.u32 %v51, 127
    %v53 = vlaneseq
    %v54 = vshrl.u32 %v53, 7
    %v55 = vsub.s32 %v52, %v54
    %v56 = vrot.slane %v45, %v55
    %v57 = vlaneseq
    %v58 = vshrl.u32 %v57, 7
    %v59 = vsub.s32 %v52, %v58
    %v60 = vrot.slane %v48, %v59
    %vm61 = vcmask 1041409
    %v62 = vsel %vm61, %v60, %v56
    %vm64 = vcmask 58368
    %v65 = vsel %vm64, %v62, -inf
    %66 = vmax.xlane.f32.xlu0 %v65
    %v67 = vpop.xlane.xlu0 %66
    %v69 = vlaneseq
    %v70 = vshrl.u32 %v69, 7
    %v71 = vsub.s32 0, %v70
    %v72 = vrot.slane %v67, %v71
    %v73 = vlaneseq
    %v74 = vshrl.u32 %v73, 7
    %v75 = vsub.s32 1, %v74
    %v76 = vrot.slane %v67, %v75
    %v79 = vsub.f32 %v45, %v72
    %v80 = vsub.f32 %v48, %v76
    %v81 = vmul.f32 %v79, 1.442695
    %v82 = vpow.pop %v81
    %v83 = vmul.f32 %v80, 1.442695
    %v84 = vpow.pop %v83
    %87 = vset.pattern.permute.xlu0 0
    %88 = vperm.xlu0 %87, %v82
    %v89 = vpop.permute.xlu0 %88
    %90 = vset.pattern.permute.xlu0 0
    %91 = vperm.xlu0 %90, %v84
    %v92 = vpop.permute.xlu0 %91
    %v93 = vlaneseq
    %v94 = vshrl.u32 %v93, 7
    %v95 = vsub.s32 %v52, %v94
    %v96 = vrot.slane %v89, %v95
    %v97 = vlaneseq
    %v98 = vshrl.u32 %v97, 7
    %v99 = vsub.s32 %v52, %v98
    %v100 = vrot.slane %v92, %v99
    %v101 = vsel %vm61, %v100, %v96
    %v103 = vsel %vm64, %v101, 0.0
    %104 = vadd.xlane.f32.xlu0 %v103
    %v105 = vpop.xlane.xlu0 %104
    %v106 = vrcp.pop %v105
    %v107 = vmul.f32 %v105, %v106
    %v108 = vsub.f32 2.0, %v107
    %v109 = vmul.f32 %v106, %v108
    %v111 = vlaneseq
    %v112 = vshrl.u32 %v111, 7
    %v113 = vsub.s32 0, %v112
    %v114 = vrot.slane %v109, %v113
    %v115 = vlaneseq
    %v116 = vshrl.u32 %v115, 7
    %v117 = vsub.s32 1, %v116
    %v118 = vrot.slane %v109, %v117
    %v121 = vmul.f32 %v82, %v114
    %v122 = vmul.f32 %v84, %v118
    %124 = vset.pattern.permute.xlu0 0
    %125 = vperm.xlu0 %124, %v121
    %v126 = vpop.permute.xlu0 %125
    %129 = vset.pattern.permute.xlu0 0
    %130 = vperm.xlu0 %129, %v122
    %v131 = vpop.permute.xlu0 %130
    %v133 = vmul.f32 %v29, %v126
    %v134 = vmul.f32 %v30, %v131
    %v135 = vsel %vm42, %v133, 0.0
    %v136 = vrot.slane %v135, 4
    %v137 = vadd.f32 %v135, %v136
    %v138 = vrot.slane %v137, 2
    %v139 = vadd.f32 %v137, %v138
    %v140 = vrot.slane %v139, 1
    %v141 = vadd.f32 %v139, %v140
    %v142 = vsel %vm42, %v134, 0.0
    %v143 = vrot.slane %v142, 4
    %v144 = vadd.f32 %v142, %v143
    %v145 = vrot.slane %v144, 2
    %v146 = vadd.f32 %v144, %v145
    %v147 = vrot.slane %v146, 1
    %v148 = vadd.f32 %v146, %v147
    %v151 = vsel %vm61, %v148, %v141
    %vm153 = vcmask 254976
    %154 = vst.msk [vmem:[#allocation5] sm:$0x3] %vm153, %v151
    %v155 = vlaneseq
    %v156 = vshrl.u32 %v155, 7
    %v157 = vsub.s32 %v52, %v156
    %v158 = vrot.slane %v126, %v157
    %v159 = vlaneseq
    %v160 = vshrl.u32 %v159, 7
    %v161 = vsub.s32 %v52, %v160
    %v162 = vrot.slane %v131, %v161
    %v163 = vsel %vm61, %v162, %v158
    %165 = vst.msk [vmem:[#allocation6] sm:$0x3] %vm64, %v163
    // Predicated region
    $region14: #{tpu_custom_call.1} parent=1 // pred_check
      _
    $region15: #{tpu_custom_call.1} parent=1 // pred_check_branch
      %167 = sbr.rel (0) target = $region17
    $region16: #{tpu_custom_call.1} parent=1 // pred_region
      %s169 = ssub.s32 32, 32
      %170 = vsyncadd [#allocation4], %s169
      %s172 = sshll.u32 [#allocation5], 4
      %s173 = int_to_ptr.vmem [resolvable:$true] %s172
      %175 = dma.vmem_to_hbm [thread:$0]  %s173, 32, %s2, [#allocation4]
    $region17: #{tpu_custom_call.1} parent=1 // pred_fallthru
      _
    // Predicated region
    $region18: #{tpu_custom_call.1} parent=1 // pred_check
      _
    $region19: #{tpu_custom_call.1} parent=1 // pred_check_branch
      %177 = sbr.rel (0) target = $region21
    $region20: #{tpu_custom_call.1} parent=1 // pred_region
      %s179 = ssub.s32 32, 32
      %180 = vsyncadd [#allocation7], %s179
      %s182 = sshll.u32 [#allocation6], 4
      %s183 = int_to_ptr.vmem [resolvable:$true] %s182
      %185 = dma.vmem_to_hbm [thread:$0]  %s183, 32, %s3, [#allocation7]
    $region21: #{tpu_custom_call.1} parent=1 // pred_fallthru
      _
    // Predicated region
    $region22: #{tpu_custom_call.1} parent=1 // pred_check
      _
    $region23: #{tpu_custom_call.1} parent=1 // pred_check_branch
      %187 = sbr.rel (0) target = $region25
    $region24: #{tpu_custom_call.1} parent=1 // pred_region
      %188 = dma.done [#allocation4], 32
    $region25: #{tpu_custom_call.1} parent=1 // pred_fallthru
      _
    // Predicated region
    $region26: #{tpu_custom_call.1} parent=1 // pred_check
      _
    $region27: #{tpu_custom_call.1} parent=1 // pred_check_branch
      %190 = sbr.rel (0) target = $region29
    $region28: #{tpu_custom_call.1} parent=1 // pred_region
      %191 = dma.done [#allocation7], 32
    $region29: #{tpu_custom_call.1} parent=1 // pred_fallthru
      _
    %192 = vsyncpa [#allocation3], 1
    %193 = vsyncpa [#allocation4], 1
    %194 = vsyncpa [#allocation7], 1

</llo_original>
